<compile_context>
chip_gen: v6e
topology: v6e:2x2x1
jax: 0.10.0
libtpu: 0.0.40
codegen_flags: <defaults>
</compile_context>

<pallas_src>
import functools

import jax
import jax.numpy as jnp
from jax.experimental import pallas as pl
from jax.experimental.pallas import tpu as pltpu

INPUT_DIM = 8
HIDDEN = 64
LANE = 128


def _round_up(n, m):
    return ((n + m - 1) // m) * m


def _choose_tb(batch, cap):
    """Pick the per-tile batch width (lane axis)."""
    if batch <= LANE:
        return batch  # single full-extent tile (block == array dims, always legal)
    # >= 4 tiles when B allows so v7x's two TensorCores both get work
    # (v5e/v6e have one TC — harmless); lane width must be a multiple of 128.
    tb = _round_up(pl.cdiv(batch, 4), LANE)
    return max(LANE, min(cap, tb))


def mlp_kernel(xt_ref, w1_ref, b1_ref, w3_ref, b3_ref, out_ref):
    # xt_ref:  (INPUT_DIM, TB)   batch on the lane axis (dense tile, dense DMA)
    # w1_ref:  (HIDDEN, INPUT_DIM)   == PyTorch linear1.weight, used directly
    # b1_ref:  (HIDDEN, 1)           column bias, broadcast across lanes (batch)
    # w3_ref:  (1, HIDDEN)           == PyTorch linear3.weight, used directly
    # b3_ref:  (1, 1) scalar in SMEM
    # out_ref: (1, TB)               lane-dense output block
    x_t = xt_ref[...]

    # linear1 + ReLU: (HIDDEN, INPUT_DIM) @ (INPUT_DIM, TB) -> (HIDDEN, TB)
    h = jnp.dot(w1_ref[...], x_t, preferred_element_type=jnp.float32)
    h = jnp.maximum(h + b1_ref[...], 0.0)

    # dropout: eval-mode identity (deterministic forward)
    # TODO(synk): training-mode dropout would use pltpu.prng_seed + stateful_bernoulli.

    # linear3: (1, HIDDEN) @ (HIDDEN, TB) -> (1, TB), lane-dense store.
    out = jnp.dot(w3_ref[...], h, preferred_element_type=jnp.float32)
    out_ref[...] = (out + b3_ref[0, 0]).astype(out_ref.dtype)


@functools.partial(jax.jit, static_argnames=("tb_cap",))
def network_forward(x, w1, b1, w3, b3, *, tb_cap=8192):
    """x: (B, INPUT_DIM); w1: (HIDDEN, INPUT_DIM); b1: (HIDDEN,);
    w3: (1, HIDDEN); b3: (1,).  (PyTorch nn.Linear layouts.)  Returns (B, 1)."""
    B = x.shape[0]

    # Batch-last feed.  Ideally the producer already holds x as (INPUT_DIM, B);
    # here it is a single small transpose (replaces the old pad round-trip).
    x_t = x.T                              # (INPUT_DIM, B)
    b1_col = b1.reshape(HIDDEN, 1)         # bias broadcasts across lanes (batch)
    b3_smem = b3.reshape(1, 1)             # scalar, lives in SMEM

    TB = _choose_tb(B, tb_cap)
    grid = pl.cdiv(B, TB)                  # ragged last tile handled by Pallas

    # Advisory cost estimate so XLA can overlap this tiny call with neighbors.
    flops = 2 * B * INPUT_DIM * HIDDEN + 2 * B * HIDDEN + 2 * B * HIDDEN
    bytes_accessed = 4 * (B * INPUT_DIM + HIDDEN * INPUT_DIM + 2 * HIDDEN + 1 + B)

    out = pl.pallas_call(
        mlp_kernel,
        out_shape=jax.ShapeDtypeStruct((1, B), jnp.float32),
        grid=(grid,),
        in_specs=[
            pl.BlockSpec((INPUT_DIM, TB), lambda i: (0, i)),        # x tile (dense, pipelined)
            pl.BlockSpec((HIDDEN, INPUT_DIM), lambda i: (0, 0)),    # w1 VMEM-resident
            pl.BlockSpec((HIDDEN, 1), lambda i: (0, 0)),            # b1 column resident
            pl.BlockSpec((1, HIDDEN), lambda i: (0, 0)),            # w3 row resident
            pl.BlockSpec(memory_space=pltpu.MemorySpace.SMEM),      # b3 scalar in SMEM
        ],
        out_specs=pl.BlockSpec((1, TB), lambda i: (0, i)),          # lane-dense output
        compiler_params=pltpu.CompilerParams(
            dimension_semantics=("parallel",),  # v7x: 2 TCs split the batch tiles
        ),
        cost_estimate=pl.CostEstimate(
            flops=flops, transcendentals=0, bytes_accessed=bytes_accessed
        ),
    )(x_t, w1, b1_col, w3, b3_smem)

    # (1, B) row-major == (B,) order, so this reshape preserves row order.
    return out.reshape(B, 1)


def reference_forward(x, w1, b1, w3, b3):
    h = jnp.maximum(x @ w1.T + b1, 0.0)
    return h @ w3.T + b3


if __name__ == "__main__":
    key = jax.random.PRNGKey(0)
    kx, k1, kb1, k3, kb3 = jax.random.split(key, 5)

    # Deterministic parameter init (mimicking nn.Linear's uniform bounds),
    # stored in PyTorch layout: weight = (out_features, in_features).
    bound1 = 1.0 / (INPUT_DIM ** 0.5)
    w1 = jax.random.uniform(k1, (HIDDEN, INPUT_DIM), jnp.float32, -bound1, bound1)
    b1 = jax.random.uniform(kb1, (HIDDEN,), jnp.float32, -bound1, bound1)

    bound3 = 1.0 / (HIDDEN ** 0.5)
    w3 = jax.random.uniform(k3, (1, HIDDEN), jnp.float32, -bound3, bound3)
    b3 = jax.random.uniform(kb3, (1,), jnp.float32, -bound3, bound3)

    # Cover: tiny single full-extent tile, a ragged multi-tile case with a
    # nearly-empty last tile, and a larger multi-tile ragged case.
    for B in (8, 257, 1040):
        x = jax.random.normal(jax.random.fold_in(kx, B), (B, INPUT_DIM),
                              dtype=jnp.float32)
        out = jax.block_until_ready(network_forward(x, w1, b1, w3, b3))
        ref = reference_forward(x, w1, b1, w3, b3)
        assert out.shape == (B, 1)
        assert jnp.allclose(out, ref, atol=1e-5, rtol=1e-5), f"mismatch at B={B}"

    print("KERNEL_OK")
</pallas_src>

<mosaic_0001>
module attributes {stable_mosaic.version = 11 : i64} {
  func.func @mlp_kernel(%arg0: i32, %arg1: memref<8x8xf32, #tpu.memory_space<vmem>>, %arg2: memref<64x8xf32, #tpu.memory_space<vmem>>, %arg3: memref<64x1xf32, #tpu.memory_space<vmem>>, %arg4: memref<1x64xf32, #tpu.memory_space<vmem>>, %arg5: memref<1x1xf32, #tpu.memory_space<smem>>, %arg6: memref<1x8xf32, #tpu.memory_space<vmem>>) attributes {dimension_semantics = [#tpu.dimension_semantics<parallel>], iteration_bounds = array<i64: 1>, scalar_prefetch = 0 : i64, scratch_operands = 0 : i64, tpu.core_type = #tpu.core_type<tc>, window_params = [{transform_indices = @transform_0, window_bounds = array<i64: 8, 8>}, {pipeline_mode = #tpu.pipeline_mode<synchronous>, transform_indices = @transform_1, window_bounds = array<i64: 64, 8>}, {pipeline_mode = #tpu.pipeline_mode<synchronous>, transform_indices = @transform_2, window_bounds = array<i64: 64, 1>}, {pipeline_mode = #tpu.pipeline_mode<synchronous>, transform_indices = @transform_3, window_bounds = array<i64: 1, 64>}, {transform_indices = @transform_4, window_bounds = array<i64: 1, 1>}, {transform_indices = @transform_5, window_bounds = array<i64: 1, 8>}]} {
    %c0 = arith.constant 0 : index
    %c0_0 = arith.constant 0 : index
    %0 = vector.load %arg1[%c0, %c0_0] : memref<8x8xf32, #tpu.memory_space<vmem>>, vector<8x8xf32>
    %c0_1 = arith.constant 0 : index
    %c0_2 = arith.constant 0 : index
    %1 = vector.load %arg2[%c0_1, %c0_2] : memref<64x8xf32, #tpu.memory_space<vmem>>, vector<64x8xf32>
    %cst = arith.constant dense<0.000000e+00> : vector<64x8xf32>
    %2 = tpu.matmul %1, %0, %cst {dimension_numbers = #tpu.dot_dimension_numbers<[1], [0], [0], [1], [0, 0, 1, 1], [], []>} : vector<64x8xf32>, vector<8x8xf32>, vector<64x8xf32> -> vector<64x8xf32>
    %c0_3 = arith.constant 0 : index
    %c0_4 = arith.constant 0 : index
    %3 = vector.load %arg3[%c0_3, %c0_4] : memref<64x1xf32, #tpu.memory_space<vmem>>, vector<64x1xf32>
    %4 = vector.broadcast %3 : vector<64x1xf32> to vector<64x8xf32>
    %5 = arith.addf %2, %4 : vector<64x8xf32>
    %cst_5 = arith.constant 0.000000e+00 : f32
    %6 = vector.broadcast %cst_5 : f32 to vector<64x8xf32>
    %7 = arith.maximumf %5, %6 : vector<64x8xf32>
    %c0_6 = arith.constant 0 : index
    %c0_7 = arith.constant 0 : index
    %8 = vector.load %arg4[%c0_6, %c0_7] : memref<1x64xf32, #tpu.memory_space<vmem>>, vector<1x64xf32>
    %cst_8 = arith.constant dense<0.000000e+00> : vector<1x8xf32>
    %9 = tpu.matmul %8, %7, %cst_8 {dimension_numbers = #tpu.dot_dimension_numbers<[1], [0], [0], [1], [0, 0, 1, 1], [], []>} : vector<1x64xf32>, vector<64x8xf32>, vector<1x8xf32> -> vector<1x8xf32>
    %c0_9 = arith.constant 0 : index
    %c0_10 = arith.constant 0 : index
    %10 = memref.load %arg5[%c0_9, %c0_10] : memref<1x1xf32, #tpu.memory_space<smem>>
    %11 = vector.broadcast %10 : f32 to vector<1x8xf32>
    %12 = arith.addf %9, %11 : vector<1x8xf32>
    %c0_11 = arith.constant 0 : index
    %c0_12 = arith.constant 0 : index
    %13 = vector.load %arg6[%c0_11, %c0_12] : memref<1x8xf32, #tpu.memory_space<vmem>>, vector<1x8xf32>
    tpu.vector_store %arg6[%c0_11, %c0_12], %12 {strides = array<i32>} : memref<1x8xf32, #tpu.memory_space<vmem>>, vector<1x8xf32>,
    return
  }
  func.func @transform_0(%arg0: i32) -> (i32, i32) {
    %c0_i32 = arith.constant 0 : i32
    %c0_i32_0 = arith.constant 0 : i32
    return %c0_i32, %arg0 : i32, i32
  }
  func.func @transform_1(%arg0: i32) -> (i32, i32) {
    %c0_i32 = arith.constant 0 : i32
    %c0_i32_0 = arith.constant 0 : i32
    %c0_i32_1 = arith.constant 0 : i32
    return %c0_i32, %c0_i32_0 : i32, i32
  }
  func.func @transform_2(%arg0: i32) -> (i32, i32) {
    %c0_i32 = arith.constant 0 : i32
    %c0_i32_0 = arith.constant 0 : i32
    %c0_i32_1 = arith.constant 0 : i32
    return %c0_i32, %c0_i32_0 : i32, i32
  }
  func.func @transform_3(%arg0: i32) -> (i32, i32) {
    %c0_i32 = arith.constant 0 : i32
    %c0_i32_0 = arith.constant 0 : i32
    %c0_i32_1 = arith.constant 0 : i32
    return %c0_i32, %c0_i32_0 : i32, i32
  }
  func.func @transform_4(%arg0: i32) -> (i32, i32) {
    %c0_i32 = arith.constant 0 : i32
    %c0_i32_0 = arith.constant 0 : i32
    %c0_i32_1 = arith.constant 0 : i32
    return %c0_i32, %c0_i32_0 : i32, i32
  }
  func.func @transform_5(%arg0: i32) -> (i32, i32) {
    %c0_i32 = arith.constant 0 : i32
    %c0_i32_0 = arith.constant 0 : i32
    return %c0_i32, %arg0 : i32, i32
  }
}

</mosaic_0001>

<llo_original>
// kernel: network_forward.1
$region0: #{network_forward.1}
  #allocation0 [shape = 'u32[]', space=smem, size = 0x4, offset = 0x4, fixed_abs, tag = 'smem constant byte address 0x4 - core index']
  #allocation1 [shape = 'u32[144,128]{1,0:T(1,128)}', space=vmem, size = 0x12000, scoped, tag = 'internal scratch']
  #allocation2 [shape = 'f32[1,1]{1,0:T(1,128)S(6)}', space=smem, size = 0x200, scoped, tag = 'scoped memory for network_forward.1']
  %s0 = inlined_call_operand.vmem [shape: f32[8,8], index: 0, kind: input, shape index: {}]
  %s1 = inlined_call_operand.vmem [shape: f32[64,8], index: 1, kind: input, shape index: {}]
  %s2 = inlined_call_operand.vmem [shape: f32[64,1], index: 2, kind: input, shape index: {}]
  %s3 = inlined_call_operand.vmem [shape: f32[1,64], index: 3, kind: input, shape index: {}]
  %s4 = inlined_call_operand.<no memory space> [shape: f32[1,1], index: 4, kind: input, shape index: {}]
  %s5 = inlined_call_operand.hbm [shape: f32[1,8], index: 5, kind: output, shape index: {}]
  %s6 = sld [smem:[#allocation0]]
  $region30: #{network_forward.1} parent=0
    _
  %s8 = ssub.s32 1, %s6
  %s9 = scalar_select 0, %s8, %s6
  %10 = sst [smem:[#allocation2]] %s4
  $region1: #{network_forward.1} parent=0
    #allocation3 [shape = 'u8[512]{0}', space=vmem, size = 0x400, scoped, tag = 'output window, operand 0, single buffered']
    #allocation4 [shape = 's32[1]{0}', space=sflag, size = 0x4, scoped, tag = 'scoped memory for network_forward.1']
    %11 = vsyncpa [#allocation4], 0
    // Predicated region
    $region2: #{network_forward.1} parent=1 // pred_check
      _
    $region3: #{network_forward.1} parent=1 // pred_check_branch
      %13 = sbr.rel (0) target = $region5
    $region4: #{network_forward.1} parent=1 // pred_region
      _
    $region5: #{network_forward.1} parent=1 // pred_fallthru
      _
    // Predicated region
    $region6: #{network_forward.1} parent=1 // pred_check
      _
    $region7: #{network_forward.1} parent=1 // pred_check_branch
      %15 = sbr.rel (0) target = $region9
    $region8: #{network_forward.1} parent=1 // pred_region
      _
    $region9: #{network_forward.1} parent=1 // pred_fallthru
      _
    // Predicated region
    $region10: #{network_forward.1} parent=1 // pred_check
      _
    $region11: #{network_forward.1} parent=1 // pred_check_branch
      %17 = sbr.rel (0) target = $region13
    $region12: #{network_forward.1} parent=1 // pred_region
      _
    $region13: #{network_forward.1} parent=1 // pred_fallthru
      _
    // Predicated region
    $region14: #{network_forward.1} parent=1 // pred_check
      _
    $region15: #{network_forward.1} parent=1 // pred_check_branch
      %19 = sbr.rel (0) target = $region17
    $region16: #{network_forward.1} parent=1 // pred_region
      _
    $region17: #{network_forward.1} parent=1 // pred_fallthru
      _
    // Predicated region
    $region18: #{network_forward.1} parent=1 // pred_check
      _
    $region19: #{network_forward.1} parent=1 // pred_check_branch
      %21 = sbr.rel (0) target = $region21
    $region20: #{network_forward.1} parent=1 // pred_region
      _
    $region21: #{network_forward.1} parent=1 // pred_fallthru
      _
    %v22 = vld [vmem:[%s0] sm:$0xff]
    %v23 = vld [vmem:[%s1] sm:$0xff]
    %v24 = vld [vmem:[%s1 + $0x8] sm:$0xff]
    %v25 = vld [vmem:[%s1 + $0x10] sm:$0xff]
    %v26 = vld [vmem:[%s1 + $0x18] sm:$0xff]
    %v27 = vld [vmem:[%s1 + $0x20] sm:$0xff]
    %v28 = vld [vmem:[%s1 + $0x28] sm:$0xff]
    %v29 = vld [vmem:[%s1 + $0x30] sm:$0xff]
    %v30 = vld [vmem:[%s1 + $0x38] sm:$0xff]
    %v31 = vld [vmem:[%s2] sm:$0xff]
    %v32 = vld [vmem:[%s2 + $0x8] sm:$0xff]
    %v33 = vld [vmem:[%s2 + $0x10] sm:$0xff]
    %v34 = vld [vmem:[%s2 + $0x18] sm:$0xff]
    %v35 = vld [vmem:[%s2 + $0x20] sm:$0xff]
    %v36 = vld [vmem:[%s2 + $0x28] sm:$0xff]
    %v37 = vld [vmem:[%s2 + $0x30] sm:$0xff]
    %v38 = vld [vmem:[%s2 + $0x38] sm:$0xff]
    %40 = vset.pattern.permute.xlu0 0
    %41 = vperm.xlu0 %40, %v31
    %v42 = vpop.permute.xlu0 %41
    %45 = vset.pattern.permute.xlu0 0
    %46 = vperm.xlu0 %45, %v32
    %v47 = vpop.permute.xlu0 %46
    %50 = vset.pattern.permute.xlu0 0
    %51 = vperm.xlu0 %50, %v33
    %v52 = vpop.permute.xlu0 %51
    %55 = vset.pattern.permute.xlu0 0
    %56 = vperm.xlu0 %55, %v34
    %v57 = vpop.permute.xlu0 %56
    %60 = vset.pattern.permute.xlu0 0
    %61 = vperm.xlu0 %60, %v35
    %v62 = vpop.permute.xlu0 %61
    %65 = vset.pattern.permute.xlu0 0
    %66 = vperm.xlu0 %65, %v36
    %v67 = vpop.permute.xlu0 %66
    %70 = vset.pattern.permute.xlu0 0
    %71 = vperm.xlu0 %70, %v37
    %v72 = vpop.permute.xlu0 %71
    %75 = vset.pattern.permute.xlu0 0
    %76 = vperm.xlu0 %75, %v38
    %v77 = vpop.permute.xlu0 %76
    %vm79 = vcmask 64512
    %v81 = vsel %vm79, %v23, 0
    %v84 = vsel %vm79, %v24, 0
    %v87 = vsel %vm79, %v25, 0
    %v90 = vsel %vm79, %v26, 0
    %v93 = vsel %vm79, %v27, 0
    %v96 = vsel %vm79, %v28, 0
    %v99 = vsel %vm79, %v29, 0
    %v102 = vsel %vm79, %v30, 0
    %104 = vmatprep.subr.mxu0 0.0
    %105 = vmatpush1.msra.mxu0 0.0
    %106 = vmatprep.subr.mxu0 0.0
    %107 = vmatpush1.msra.mxu0 0.0
    %108 = vmatprep.subr.mxu0 0.0
    %109 = vmatpush1.msra.mxu0 0.0
    %110 = vmatprep.subr.mxu0 0.0
    %111 = vmatpush1.msra.mxu0 0.0
    %112 = vmatprep.subr.mxu0 0.0
    %113 = vmatpush1.msra.mxu0 0.0
    %114 = vmatprep.subr.mxu0 0.0
    %115 = vmatpush1.msra.mxu0 0.0
    %116 = vmatprep.subr.mxu0 0.0
    %117 = vmatpush1.msra.mxu0 0.0
    %118 = vmatprep.subr.mxu0 0.0
    %119 = vmatpush1.msra.mxu0 0.0
    %120 = vmatprep.subr.mxu0 0.0
    %121 = vmatpush1.msra.mxu0 0.0
    %122 = vmatprep.subr.mxu0 0.0
    %123 = vmatpush1.msra.mxu0 0.0
    %124 = vmatprep.subr.mxu0 0.0
    %125 = vmatpush1.msra.mxu0 0.0
    %126 = vmatprep.subr.mxu0 0.0
    %127 = vmatpush1.msra.mxu0 0.0
    %128 = vmatprep.subr.mxu0 0.0
    %129 = vmatpush1.msra.mxu0 0.0
    %130 = vmatprep.subr.mxu0 0.0
    %131 = vmatpush1.msra.mxu0 0.0
    %132 = vmatprep.subr.mxu0 0.0
    %133 = vmatpush1.msra.mxu0 0.0
    %134 = vmatprep.subr.mxu0 0.0
    %135 = vmatpush1.msra.mxu0 %v22
    %136 = vmatprep.subr.mxu0 0.0
    %137 = vmatpush2.msra.mxu0 0.0
    %138 = vmatprep.subr.mxu0 0.0
    %139 = vmatpush2.msra.mxu0 0.0
    %140 = vmatprep.subr.mxu0 0.0
    %141 = vmatpush2.msra.mxu0 0.0
    %142 = vmatprep.subr.mxu0 0.0
    %143 = vmatpush2.msra.mxu0 0.0
    %144 = vmatprep.subr.mxu0 0.0
    %145 = vmatpush2.msra.mxu0 0.0
    %146 = vmatprep.subr.mxu0 0.0
    %147 = vmatpush2.msra.mxu0 0.0
    %148 = vmatprep.subr.mxu0 0.0
    %149 = vmatpush2.msra.mxu0 0.0
    %150 = vmatprep.subr.mxu0 0.0
    %151 = vmatpush2.msra.mxu0 0.0
    %152 = vmatprep.subr.mxu0 0.0
    %153 = vmatpush2.msra.mxu0 0.0
    %154 = vmatprep.subr.mxu0 0.0
    %155 = vmatpush2.msra.mxu0 0.0
    %156 = vmatprep.subr.mxu0 0.0
    %157 = vmatpush2.msra.mxu0 0.0
    %158 = vmatprep.subr.mxu0 0.0
    %159 = vmatpush2.msra.mxu0 0.0
    %160 = vmatprep.subr.mxu0 0.0
    %161 = vmatpush2.msra.mxu0 0.0
    %162 = vmatprep.subr.mxu0 0.0
    %163 = vmatpush2.msra.mxu0 0.0
    %164 = vmatprep.subr.mxu0 0.0
    %165 = vmatpush2.msra.mxu0 0.0
    %166 = vmatprep.subr.mxu0 0.0
    %167 = vmatpush2.msra.mxu0 0.0
    %168 = vmatprep.mubr.f32.mxu0 0.0
    %169 = vmatmul.mubr.f32.gmra.mxu0 %v81
    %v170 = vpop.f32.mrf.mxu0
    %v171 = vadd.f32 %v42, %v170
    %v172 = vpop.f32.mrf.mxu0
    %173 = vmatprep.mubr.f32.mxu0 0.0
    %174 = vmatmul.mubr.f32.gmra.mxu0 %v84
    %v175 = vpop.f32.mrf.mxu0
    %v176 = vadd.f32 %v47, %v175
    %v177 = vpop.f32.mrf.mxu0
    %178 = vmatprep.mubr.f32.mxu0 0.0
    %179 = vmatmul.mubr.f32.gmra.mxu0 %v87
    %v180 = vpop.f32.mrf.mxu0
    %v181 = vadd.f32 %v52, %v180
    %v182 = vpop.f32.mrf.mxu0
    %183 = vmatprep.mubr.f32.mxu0 0.0
    %184 = vmatmul.mubr.f32.gmra.mxu0 %v90
    %v185 = vpop.f32.mrf.mxu0
    %v186 = vadd.f32 %v57, %v185
    %v187 = vpop.f32.mrf.mxu0
    %188 = vmatprep.mubr.f32.mxu0 0.0
    %189 = vmatmul.mubr.f32.gmra.mxu0 %v93
    %v190 = vpop.f32.mrf.mxu0
    %v191 = vadd.f32 %v62, %v190
    %v192 = vpop.f32.mrf.mxu0
    %193 = vmatprep.mubr.f32.mxu0 0.0
    %194 = vmatmul.mubr.f32.gmra.mxu0 %v96
    %v195 = vpop.f32.mrf.mxu0
    %v196 = vadd.f32 %v67, %v195
    %v197 = vpop.f32.mrf.mxu0
    %198 = vmatprep.mubr.f32.mxu0 0.0
    %199 = vmatmul.mubr.f32.gmra.mxu0 %v99
    %v200 = vpop.f32.mrf.mxu0
    %v201 = vadd.f32 %v72, %v200
    %v202 = vpop.f32.mrf.mxu0
    %203 = vmatprep.mubr.f32.mxu0 0.0
    %204 = vmatmul.mubr.f32.gmra.mxu0 %v102
    %v205 = vpop.f32.mrf.mxu0
    %v206 = vadd.f32 %v77, %v205
    %v207 = vpop.f32.mrf.mxu0
    %208 = vdwg.mxu0
    %v209 = vmax.f32 %v171, 0.0
    %v210 = vmax.f32 %v176, 0.0
    %v211 = vmax.f32 %v181, 0.0
    %v212 = vmax.f32 %v186, 0.0
    %v213 = vmax.f32 %v191, 0.0
    %v214 = vmax.f32 %v196, 0.0
    %v215 = vmax.f32 %v201, 0.0
    %v216 = vmax.f32 %v206, 0.0
    %v217 = vld [vmem:[%s3] sm:$0x1]
    %s218 = sld [smem:[#allocation2]]
    %v219 = vstv %s218
    %vm220 = vcmask 523264
    %v222 = vsel %vm220, %v217, 0
    %224 = vmatprep.subr.mxu0 0.0
    %225 = vmatpush1.msra.mxu0 0.0
    %226 = vmatprep.subr.mxu0 0.0
    %227 = vmatpush1.msra.mxu0 0.0
    %228 = vmatprep.subr.mxu0 0.0
    %229 = vmatpush1.msra.mxu0 0.0
    %230 = vmatprep.subr.mxu0 0.0
    %231 = vmatpush1.msra.mxu0 0.0
    %232 = vmatprep.subr.mxu0 0.0
    %233 = vmatpush1.msra.mxu0 0.0
    %234 = vmatprep.subr.mxu0 0.0
    %235 = vmatpush1.msra.mxu0 0.0
    %236 = vmatprep.subr.mxu0 0.0
    %237 = vmatpush1.msra.mxu0 0.0
    %238 = vmatprep.subr.mxu0 0.0
    %239 = vmatpush1.msra.mxu0 0.0
    %240 = vmatprep.subr.mxu0 0.0
    %241 = vmatpush1.msra.mxu0 %v216
    %242 = vmatprep.subr.mxu0 0.0
    %243 = vmatpush1.msra.mxu0 %v215
    %244 = vmatprep.subr.mxu0 0.0
    %245 = vmatpush1.msra.mxu0 %v214
    %246 = vmatprep.subr.mxu0 0.0
    %247 = vmatpush1.msra.mxu0 %v213
    %248 = vmatprep.subr.mxu0 0.0
    %249 = vmatpush1.msra.mxu0 %v212
    %250 = vmatprep.subr.mxu0 0.0
    %251 = vmatpush1.msra.mxu0 %v211
    %252 = vmatprep.subr.mxu0 0.0
    %253 = vmatpush1.msra.mxu0 %v210
    %254 = vmatprep.subr.mxu0 0.0
    %255 = vmatpush1.msra.mxu0 %v209
    %256 = vmatprep.subr.mxu0 0.0
    %257 = vmatpush2.msra.mxu0 0.0
    %258 = vmatprep.subr.mxu0 0.0
    %259 = vmatpush2.msra.mxu0 0.0
    %260 = vmatprep.subr.mxu0 0.0
    %261 = vmatpush2.msra.mxu0 0.0
    %262 = vmatprep.subr.mxu0 0.0
    %263 = vmatpush2.msra.mxu0 0.0
    %264 = vmatprep.subr.mxu0 0.0
    %265 = vmatpush2.msra.mxu0 0.0
    %266 = vmatprep.subr.mxu0 0.0
    %267 = vmatpush2.msra.mxu0 0.0
    %268 = vmatprep.subr.mxu0 0.0
    %269 = vmatpush2.msra.mxu0 0.0
    %270 = vmatprep.subr.mxu0 0.0
    %271 = vmatpush2.msra.mxu0 0.0
    %272 = vmatprep.subr.mxu0 0.0
    %273 = vmatpush2.msra.mxu0 0.0
    %274 = vmatprep.subr.mxu0 0.0
    %275 = vmatpush2.msra.mxu0 0.0
    %276 = vmatprep.subr.mxu0 0.0
    %277 = vmatpush2.msra.mxu0 0.0
    %278 = vmatprep.subr.mxu0 0.0
    %279 = vmatpush2.msra.mxu0 0.0
    %280 = vmatprep.subr.mxu0 0.0
    %281 = vmatpush2.msra.mxu0 0.0
    %282 = vmatprep.subr.mxu0 0.0
    %283 = vmatpush2.msra.mxu0 0.0
    %284 = vmatprep.subr.mxu0 0.0
    %285 = vmatpush2.msra.mxu0 0.0
    %286 = vmatprep.subr.mxu0 0.0
    %287 = vmatpush2.msra.mxu0 0.0
    %288 = vmatprep.mubr.f32.mxu0 0.0
    %289 = vmatmul.mubr.f32.gmra.mxu0 %v222
    %v290 = vpop.f32.mrf.mxu0
    %v291 = vadd.f32 %v219, %v290
    %v292 = vpop.f32.mrf.mxu0
    %293 = vdwg.mxu0
    %vm294 = vcmask 57344
    %295 = vst.msk [vmem:[#allocation3] sm:$0x1] %vm294, %v291
    // Predicated region
    $region22: #{network_forward.1} parent=1 // pred_check
      _
    $region23: #{network_forward.1} parent=1 // pred_check_branch
      %297 = sbr.rel (0) target = $region25
    $region24: #{network_forward.1} parent=1 // pred_region
      %s299 = ssub.s32 16, 16
      %300 = vsyncadd [#allocation4], %s299
      %s302 = sshll.u32 [#allocation3], 4
      %s303 = int_to_ptr.vmem [resolvable:$true] %s302
      %305 = dma.vmem_to_hbm [thread:$0]  %s303, 16, %s5, [#allocation4]
    $region25: #{network_forward.1} parent=1 // pred_fallthru
      _
    // Predicated region
    $region26: #{network_forward.1} parent=1 // pred_check
      _
    $region27: #{network_forward.1} parent=1 // pred_check_branch
      %307 = sbr.rel (0) target = $region29
    $region28: #{network_forward.1} parent=1 // pred_region
      %308 = dma.done [#allocation4], 16
    $region29: #{network_forward.1} parent=1 // pred_fallthru
      _
    %309 = vsyncpa [#allocation4], 1

</llo_original>
